<compile_context>
chip_gen: v5e
topology: v5e:2x2
jax: 0.10.0
libtpu: 0.0.40
codegen_flags: <defaults>
</compile_context>

<pallas_src>
import functools

import jax
import jax.numpy as jnp
from jax.experimental import pallas as pl
from jax.experimental.pallas import tpu as pltpu

EPS = 1e-5


def _round_up(n, m):
    return ((n + m - 1) // m) * m


def rmlp_kernel(x_ref, w1_ref, b1_ref, w2_ref, b2_ref, wp_ref, bp_ref,
                rw_ref, rb_ref, out_ref, *, seq_len):
    """One M-tile: x_ref [TM, Lp] (zero-padded past seq_len), weights full (padded)."""
    x = x_ref[...]                                            # [TM, Lp] f32

    # --- RevIN 'norm': per-row stats over the (real) time lanes ---------------
    inv_len = 1.0 / float(seq_len)
    lane = jax.lax.broadcasted_iota(jnp.int32, x.shape, 1)
    valid = lane < seq_len                                    # mask out L padding
    mean = jnp.sum(x, axis=-1, keepdims=True) * inv_len       # pads are zero
    centered = jnp.where(valid, x - mean, 0.0)
    var = jnp.sum(centered * centered, axis=-1, keepdims=True) * inv_len
    var_eps = var + EPS
    inv_std = jax.lax.rsqrt(var_eps)                          # EUP, no divide
    stdev = var_eps * inv_std                                 # == sqrt(var+eps)

    rw = rw_ref[...]                                          # [TM, 1]
    rb = rb_ref[...]                                          # [TM, 1]
    xn = centered * (inv_std * rw) + rb                       # [TM, Lp]

    # --- temporal MLP (Linear -> ReLU -> Linear) along time, residual add -----
    h = jnp.maximum(
        jnp.dot(xn, w1_ref[...], preferred_element_type=jnp.float32) + b1_ref[...],
        0.0)                                                  # [TM, Dp]
    t = jnp.dot(h, w2_ref[...], preferred_element_type=jnp.float32) + b2_ref[...]
    xr = xn + t                                               # [TM, Lp]

    # --- projection seq_len -> pred_len ---------------------------------------
    pred = jnp.dot(xr, wp_ref[...], preferred_element_type=jnp.float32) + bp_ref[...]

    # --- RevIN 'denorm' --------------------------------------------------------
    inv_rw = pl.reciprocal(rw + EPS * EPS)                    # EUP, no divide
    pred = (pred - rb) * inv_rw
    pred = pred * stdev + mean                                # [TM, Pp]
    out_ref[...] = pred


def rmlp_forward(x_blc, y_unused, params, *, tm=None):
    """x_blc: [B, seq_len, channel] float32. Returns [B, pred_len, channel]."""
    del y_unused  # y is not used by the PyTorch forward either
    B, L, C = x_blc.shape
    D = params["w1"].shape[1]
    P = params["wp"].shape[1]
    M = B * C

    # Lane-dense padding of the contraction / output axes.
    Lp = _round_up(L, 128)
    Dp = _round_up(D, 128)
    Pp = _round_up(P, 128)

    # M tile: fill the MXU rows at realistic sizes, keep >=2 grid steps when small
    # (so both v7x TensorCores get work via the "parallel" axis).
    if tm is None:
        tm = 256 if M >= 512 else _round_up(max(M // 2, 1), 8)
    Mp = _round_up(M, tm)
    grid = (Mp // tm,)

    # Layout glue: [B, L, C] -> [B*C, L], zero-padded to [Mp, Lp].
    x_ml = jnp.transpose(x_blc, (0, 2, 1)).reshape(M, L)
    x_ml = jnp.pad(x_ml, ((0, Mp - M), (0, Lp - L)))

    # Weights pre-transposed as [in, out], zero-padded (pad rows/cols contribute 0).
    w1 = jnp.pad(params["w1"], ((0, Lp - L), (0, Dp - D)))
    b1 = jnp.pad(params["b1"], ((0, 0), (0, Dp - D)))
    w2 = jnp.pad(params["w2"], ((0, Dp - D), (0, Lp - L)))
    b2 = jnp.pad(params["b2"], ((0, 0), (0, Lp - L)))
    wp = jnp.pad(params["wp"], ((0, Lp - L), (0, Pp - P)))
    bp = jnp.pad(params["bp"], ((0, 0), (0, Pp - P)))

    # RevIN affine params per flattened (batch, channel) row; pad rows with
    # weight=1 / bias=0 so padded rows stay numerically benign.
    rw = jnp.tile(params["rev_w"].reshape(1, C), (B, 1)).reshape(M, 1)
    rb = jnp.tile(params["rev_b"].reshape(1, C), (B, 1)).reshape(M, 1)
    rw = jnp.pad(rw, ((0, Mp - M), (0, 0)), constant_values=1.0)
    rb = jnp.pad(rb, ((0, Mp - M), (0, 0)))

    kernel = functools.partial(rmlp_kernel, seq_len=L)

    out = pl.pallas_call(
        kernel,
        out_shape=jax.ShapeDtypeStruct((Mp, Pp), jnp.float32),
        grid_spec=pltpu.PrefetchScalarGridSpec(
            num_scalar_prefetch=0,
            grid=grid,
            in_specs=[
                pl.BlockSpec((tm, Lp), lambda m: (m, 0)),   # x tile
                pl.BlockSpec((Lp, Dp), lambda m: (0, 0)),   # W1^T (resident)
                pl.BlockSpec((1, Dp), lambda m: (0, 0)),    # b1
                pl.BlockSpec((Dp, Lp), lambda m: (0, 0)),   # W2^T
                pl.BlockSpec((1, Lp), lambda m: (0, 0)),    # b2
                pl.BlockSpec((Lp, Pp), lambda m: (0, 0)),   # Wp^T
                pl.BlockSpec((1, Pp), lambda m: (0, 0)),    # bp
                pl.BlockSpec((tm, 1), lambda m: (m, 0)),    # RevIN weight (per row)
                pl.BlockSpec((tm, 1), lambda m: (m, 0)),    # RevIN bias   (per row)
            ],
            out_specs=pl.BlockSpec((tm, Pp), lambda m: (m, 0)),
        ),
        compiler_params=pltpu.CompilerParams(
            dimension_semantics=("parallel",),
            vmem_limit_bytes=48 * 1024 * 1024,
        ),
    )(x_ml, w1, b1, w2, b2, wp, bp, rw, rb)

    # Layout glue back: [Mp, Pp] -> [B, P, C].
    out = out[:M, :P].reshape(B, C, P)
    return jnp.transpose(out, (0, 2, 1))


def reference_forward(x_blc, params):
    """Pure-JAX reference mirroring the PyTorch module, for a sanity check."""
    mean = jnp.mean(x_blc, axis=1, keepdims=True)              # [B, 1, C]
    stdev = jnp.sqrt(jnp.var(x_blc, axis=1, keepdims=True) + EPS)
    rw = params["rev_w"][:, 0]                                  # [C]
    rb = params["rev_b"][:, 0]
    xn = (x_blc - mean) / stdev * rw + rb
    xt = jnp.transpose(xn, (0, 2, 1))                           # [B, C, L]
    h = jnp.maximum(xt @ params["w1"] + params["b1"][0], 0.0)
    t = h @ params["w2"] + params["b2"][0]
    xr = xn + jnp.transpose(t, (0, 2, 1))
    pred = jnp.transpose(xr, (0, 2, 1)) @ params["wp"] + params["bp"][0]
    pred = jnp.transpose(pred, (0, 2, 1))                       # [B, P, C]
    pred = (pred - rb) / (rw + EPS * EPS)
    return pred * stdev + mean


def init_params(key, seq_len, d_model, pred_len, channel):
    k1, k2, k3, k4, k5, k6 = jax.random.split(key, 6)
    s = 0.05
    return {
        # Linear weights stored pre-transposed as [in_features, out_features]
        "w1": s * jax.random.normal(k1, (seq_len, d_model), jnp.float32),
        "b1": s * jax.random.normal(k2, (1, d_model), jnp.float32),
        "w2": s * jax.random.normal(k3, (d_model, seq_len), jnp.float32),
        "b2": s * jax.random.normal(k4, (1, seq_len), jnp.float32),
        "wp": s * jax.random.normal(k5, (seq_len, pred_len), jnp.float32),
        "bp": s * jax.random.normal(k6, (1, pred_len), jnp.float32),
        # RevIN affine params at their default init (ones / zeros)
        "rev_w": jnp.ones((channel, 1), jnp.float32),
        "rev_b": jnp.zeros((channel, 1), jnp.float32),
    }


if __name__ == "__main__":
    B, SEQ_LEN, CHANNEL, D_MODEL, PRED_LEN = 2, 16, 8, 32, 24

    key = jax.random.PRNGKey(0)
    kx, ky, kp = jax.random.split(key, 3)
    x = jax.random.normal(kx, (B, SEQ_LEN, CHANNEL), jnp.float32)
    y = jax.random.normal(ky, (B, PRED_LEN, CHANNEL), jnp.float32)  # unused, as in PyTorch
    params = init_params(kp, SEQ_LEN, D_MODEL, PRED_LEN, CHANNEL)

    out = rmlp_forward(x, y, params)
    out = jax.block_until_ready(out)

    ref = reference_forward(x, params)
    assert out.shape == (B, PRED_LEN, CHANNEL)
    assert jnp.allclose(out, ref, rtol=1e-4, atol=1e-4), "mismatch vs JAX reference"
    print("KERNEL_OK")
</pallas_src>

<mosaic_0001>
module attributes {stable_mosaic.version = 11 : i64} {
  func.func @rmlp_kernel(%arg0: i32, %arg1: memref<8x128xf32, #tpu.memory_space<vmem>>, %arg2: memref<128x128xf32, #tpu.memory_space<vmem>>, %arg3: memref<1x128xf32, #tpu.memory_space<vmem>>, %arg4: memref<128x128xf32, #tpu.memory_space<vmem>>, %arg5: memref<1x128xf32, #tpu.memory_space<vmem>>, %arg6: memref<128x128xf32, #tpu.memory_space<vmem>>, %arg7: memref<1x128xf32, #tpu.memory_space<vmem>>, %arg8: memref<8x1xf32, #tpu.memory_space<vmem>>, %arg9: memref<8x1xf32, #tpu.memory_space<vmem>>, %arg10: memref<8x128xf32, #tpu.memory_space<vmem>>) attributes {dimension_semantics = [#tpu.dimension_semantics<parallel>], iteration_bounds = array<i64: 2>, scalar_prefetch = 0 : i64, scratch_operands = 0 : i64, tpu.core_type = #tpu.core_type<tc>, window_params = [{transform_indices = @transform_0, window_bounds = array<i64: 8, 128>}, {pipeline_mode = #tpu.pipeline_mode<synchronous>, transform_indices = @transform_1, window_bounds = array<i64: 128, 128>}, {pipeline_mode = #tpu.pipeline_mode<synchronous>, transform_indices = @transform_2, window_bounds = array<i64: 1, 128>}, {pipeline_mode = #tpu.pipeline_mode<synchronous>, transform_indices = @transform_3, window_bounds = array<i64: 128, 128>}, {pipeline_mode = #tpu.pipeline_mode<synchronous>, transform_indices = @transform_4, window_bounds = array<i64: 1, 128>}, {pipeline_mode = #tpu.pipeline_mode<synchronous>, transform_indices = @transform_5, window_bounds = array<i64: 128, 128>}, {pipeline_mode = #tpu.pipeline_mode<synchronous>, transform_indices = @transform_6, window_bounds = array<i64: 1, 128>}, {transform_indices = @transform_7, window_bounds = array<i64: 8, 1>}, {transform_indices = @transform_8, window_bounds = array<i64: 8, 1>}, {transform_indices = @transform_9, window_bounds = array<i64: 8, 128>}]} {
    %c0 = arith.constant 0 : index
    %c0_0 = arith.constant 0 : index
    %0 = vector.load %arg1[%c0, %c0_0] : memref<8x128xf32, #tpu.memory_space<vmem>>, vector<8x128xf32>
    %1 = tpu.iota {dimensions = array<i32: 1>} : vector<8x128xi32>
    %c16_i32 = arith.constant 16 : i32
    %2 = vector.broadcast %c16_i32 : i32 to vector<8x128xi32>
    %3 = arith.cmpi slt, %1, %2 : vector<8x128xi32>
    %cst = arith.constant dense<0.000000e+00> : vector<8xf32>
    %4 = vector.multi_reduction <add>, %0, %cst [1] : vector<8x128xf32> to vector<8xf32>
    %5 = vector.shape_cast %4 : vector<8xf32> to vector<8x1xf32>
    %cst_1 = arith.constant 6.250000e-02 : f32
    %6 = vector.broadcast %cst_1 : f32 to vector<8x1xf32>
    %7 = arith.mulf %5, %6 : vector<8x1xf32>
    %8 = vector.broadcast %7 : vector<8x1xf32> to vector<8x128xf32>
    %9 = arith.subf %0, %8 : vector<8x128xf32>
    %cst_2 = arith.constant 0.000000e+00 : f32
    %10 = vector.broadcast %cst_2 : f32 to vector<8x128xf32>
    %11 = arith.select %3, %9, %10 : vector<8x128xi1>, vector<8x128xf32>
    %12 = arith.mulf %11, %11 : vector<8x128xf32>
    %cst_3 = arith.constant dense<0.000000e+00> : vector<8xf32>
    %13 = vector.multi_reduction <add>, %12, %cst_3 [1] : vector<8x128xf32> to vector<8xf32>
    %14 = vector.shape_cast %13 : vector<8xf32> to vector<8x1xf32>
    %cst_4 = arith.constant 6.250000e-02 : f32
    %15 = vector.broadcast %cst_4 : f32 to vector<8x1xf32>
    %16 = arith.mulf %14, %15 : vector<8x1xf32>
    %cst_5 = arith.constant 9.99999974E-6 : f32
    %17 = vector.broadcast %cst_5 : f32 to vector<8x1xf32>
    %18 = arith.addf %16, %17 : vector<8x1xf32>
    %19 = math.rsqrt %18 : vector<8x1xf32>
    %20 = arith.mulf %18, %19 : vector<8x1xf32>
    %c0_6 = arith.constant 0 : index
    %c0_7 = arith.constant 0 : index
    %21 = vector.load %arg8[%c0_6, %c0_7] : memref<8x1xf32, #tpu.memory_space<vmem>>, vector<8x1xf32>
    %c0_8 = arith.constant 0 : index
    %c0_9 = arith.constant 0 : index
    %22 = vector.load %arg9[%c0_8, %c0_9] : memref<8x1xf32, #tpu.memory_space<vmem>>, vector<8x1xf32>
    %23 = arith.mulf %19, %21 : vector<8x1xf32>
    %24 = vector.broadcast %23 : vector<8x1xf32> to vector<8x128xf32>
    %25 = arith.mulf %11, %24 : vector<8x128xf32>
    %26 = vector.broadcast %22 : vector<8x1xf32> to vector<8x128xf32>
    %27 = arith.addf %25, %26 : vector<8x128xf32>
    %c0_10 = arith.constant 0 : index
    %c0_11 = arith.constant 0 : index
    %28 = vector.load %arg2[%c0_10, %c0_11] : memref<128x128xf32, #tpu.memory_space<vmem>>, vector<128x128xf32>
    %cst_12 = arith.constant dense<0.000000e+00> : vector<8x128xf32>
    %29 = tpu.matmul %27, %28, %cst_12 {dimension_numbers = #tpu.dot_dimension_numbers<[1], [0], [0], [1], [0, 0, 1, 1], [], []>} : vector<8x128xf32>, vector<128x128xf32>, vector<8x128xf32> -> vector<8x128xf32>
    %c0_13 = arith.constant 0 : index
    %c0_14 = arith.constant 0 : index
    %30 = vector.load %arg3[%c0_13, %c0_14] : memref<1x128xf32, #tpu.memory_space<vmem>>, vector<1x128xf32>
    %31 = vector.broadcast %30 : vector<1x128xf32> to vector<8x128xf32>
    %32 = arith.addf %29, %31 : vector<8x128xf32>
    %cst_15 = arith.constant 0.000000e+00 : f32
    %33 = vector.broadcast %cst_15 : f32 to vector<8x128xf32>
    %34 = arith.maximumf %32, %33 : vector<8x128xf32>
    %c0_16 = arith.constant 0 : index
    %c0_17 = arith.constant 0 : index
    %35 = vector.load %arg4[%c0_16, %c0_17] : memref<128x128xf32, #tpu.memory_space<vmem>>, vector<128x128xf32>
    %cst_18 = arith.constant dense<0.000000e+00> : vector<8x128xf32>
    %36 = tpu.matmul %34, %35, %cst_18 {dimension_numbers = #tpu.dot_dimension_numbers<[1], [0], [0], [1], [0, 0, 1, 1], [], []>} : vector<8x128xf32>, vector<128x128xf32>, vector<8x128xf32> -> vector<8x128xf32>
    %c0_19 = arith.constant 0 : index
    %c0_20 = arith.constant 0 : index
    %37 = vector.load %arg5[%c0_19, %c0_20] : memref<1x128xf32, #tpu.memory_space<vmem>>, vector<1x128xf32>
    %38 = vector.broadcast %37 : vector<1x128xf32> to vector<8x128xf32>
    %39 = arith.addf %36, %38 : vector<8x128xf32>
    %40 = arith.addf %27, %39 : vector<8x128xf32>
    %c0_21 = arith.constant 0 : index
    %c0_22 = arith.constant 0 : index
    %41 = vector.load %arg6[%c0_21, %c0_22] : memref<128x128xf32, #tpu.memory_space<vmem>>, vector<128x128xf32>
    %cst_23 = arith.constant dense<0.000000e+00> : vector<8x128xf32>
    %42 = tpu.matmul %40, %41, %cst_23 {dimension_numbers = #tpu.dot_dimension_numbers<[1], [0], [0], [1], [0, 0, 1, 1], [], []>} : vector<8x128xf32>, vector<128x128xf32>, vector<8x128xf32> -> vector<8x128xf32>
    %c0_24 = arith.constant 0 : index
    %c0_25 = arith.constant 0 : index
    %43 = vector.load %arg7[%c0_24, %c0_25] : memref<1x128xf32, #tpu.memory_space<vmem>>, vector<1x128xf32>
    %44 = vector.broadcast %43 : vector<1x128xf32> to vector<8x128xf32>
    %45 = arith.addf %42, %44 : vector<8x128xf32>
    %cst_26 = arith.constant 1.000000e-10 : f32
    %46 = vector.broadcast %cst_26 : f32 to vector<8x1xf32>
    %47 = arith.addf %21, %46 : vector<8x1xf32>
    %48 = tpu.reciprocal %47 : vector<8x1xf32> -> vector<8x1xf32>
    %49 = vector.broadcast %22 : vector<8x1xf32> to vector<8x128xf32>
    %50 = arith.subf %45, %49 : vector<8x128xf32>
    %51 = vector.broadcast %48 : vector<8x1xf32> to vector<8x128xf32>
    %52 = arith.mulf %50, %51 : vector<8x128xf32>
    %53 = vector.broadcast %20 : vector<8x1xf32> to vector<8x128xf32>
    %54 = arith.mulf %52, %53 : vector<8x128xf32>
    %55 = vector.broadcast %7 : vector<8x1xf32> to vector<8x128xf32>
    %56 = arith.addf %54, %55 : vector<8x128xf32>
    %c0_27 = arith.constant 0 : index
    %c0_28 = arith.constant 0 : index
    %57 = vector.load %arg10[%c0_27, %c0_28] : memref<8x128xf32, #tpu.memory_space<vmem>>, vector<8x128xf32>
    tpu.vector_store %arg10[%c0_27, %c0_28], %56 {strides = array<i32>} : memref<8x128xf32, #tpu.memory_space<vmem>>, vector<8x128xf32>,
    return
  }
  func.func @transform_0(%arg0: i32) -> (i32, i32) {
    %c0_i32 = arith.constant 0 : i32
    %c0_i32_0 = arith.constant 0 : i32
    return %arg0, %c0_i32 : i32, i32
  }
  func.func @transform_1(%arg0: i32) -> (i32, i32) {
    %c0_i32 = arith.constant 0 : i32
    %c0_i32_0 = arith.constant 0 : i32
    %c0_i32_1 = arith.constant 0 : i32
    return %c0_i32, %c0_i32_0 : i32, i32
  }
  func.func @transform_2(%arg0: i32) -> (i32, i32) {
    %c0_i32 = arith.constant 0 : i32
    %c0_i32_0 = arith.constant 0 : i32
    %c0_i32_1 = arith.constant 0 : i32
    return %c0_i32, %c0_i32_0 : i32, i32
  }
  func.func @transform_3(%arg0: i32) -> (i32, i32) {
    %c0_i32 = arith.constant 0 : i32
    %c0_i32_0 = arith.constant 0 : i32
    %c0_i32_1 = arith.constant 0 : i32
    return %c0_i32, %c0_i32_0 : i32, i32
  }
  func.func @transform_4(%arg0: i32) -> (i32, i32) {
    %c0_i32 = arith.constant 0 : i32
    %c0_i32_0 = arith.constant 0 : i32
    %c0_i32_1 = arith.constant 0 : i32
    return %c0_i32, %c0_i32_0 : i32, i32
  }
  func.func @transform_5(%arg0: i32) -> (i32, i32) {
    %c0_i32 = arith.constant 0 : i32
    %c0_i32_0 = arith.constant 0 : i32
    %c0_i32_1 = arith.constant 0 : i32
    return %c0_i32, %c0_i32_0 : i32, i32
  }
  func.func @transform_6(%arg0: i32) -> (i32, i32) {
    %c0_i32 = arith.constant 0 : i32
    %c0_i32_0 = arith.constant 0 : i32
    %c0_i32_1 = arith.constant 0 : i32
    return %c0_i32, %c0_i32_0 : i32, i32
  }
  func.func @transform_7(%arg0: i32) -> (i32, i32) {
    %c0_i32 = arith.constant 0 : i32
    %c0_i32_0 = arith.constant 0 : i32
    return %arg0, %c0_i32 : i32, i32
  }
  func.func @transform_8(%arg0: i32) -> (i32, i32) {
    %c0_i32 = arith.constant 0 : i32
    %c0_i32_0 = arith.constant 0 : i32
    return %arg0, %c0_i32 : i32, i32
  }
  func.func @transform_9(%arg0: i32) -> (i32, i32) {
    %c0_i32 = arith.constant 0 : i32
    %c0_i32_0 = arith.constant 0 : i32
    return %arg0, %c0_i32 : i32, i32
  }
}

</mosaic_0001>

<llo_original>
// kernel: tpu_custom_call.1
$region0: #{tpu_custom_call.1}
  #allocation0 [shape = 'u32[]', space=smem, size = 0x4, offset = 0x4, fixed_abs, tag = 'smem constant byte address 0x4 - core index']
  #allocation1 [shape = 'u32[72,128]{1,0:T(1,128)}', space=vmem, size = 0x9000, scoped, tag = 'internal scratch']
  %s0 = inlined_call_operand.vmem [shape: f32[16,128], index: 0, kind: input, shape index: {}]
  %s1 = inlined_call_operand.hbm [shape: f32[128,128], index: 1, kind: input, shape index: {}]
  %s2 = inlined_call_operand.vmem [shape: f32[1,128], index: 2, kind: input, shape index: {}]
  %s3 = inlined_call_operand.hbm [shape: f32[128,128], index: 3, kind: input, shape index: {}]
  %s4 = inlined_call_operand.vmem [shape: f32[1,128], index: 4, kind: input, shape index: {}]
  %s5 = inlined_call_operand.hbm [shape: f32[128,128], index: 5, kind: input, shape index: {}]
  %s6 = inlined_call_operand.vmem [shape: f32[1,128], index: 6, kind: input, shape index: {}]
  %s7 = inlined_call_operand.vmem [shape: f32[16,1], index: 7, kind: input, shape index: {}]
  %s8 = inlined_call_operand.vmem [shape: f32[16,1], index: 8, kind: input, shape index: {}]
  %s9 = inlined_call_operand.hbm [shape: f32[16,128], index: 9, kind: output, shape index: {}]
  %s10 = sld [smem:[#allocation0]]
  $region81: #{tpu_custom_call.1} parent=0
    _
  %s12 = ssub.s32 1, %s10
  %s13 = scalar_select 0, %s12, %s10
  $region1: #{tpu_custom_call.1} parent=0
    #allocation2 [shape = 'u8[65536]{0}', space=vmem, size = 0x10000, scoped, tag = 'input window, operand 1, single buffered']
    #allocation3 [shape = 's32[2]{0}', space=sflag, size = 0x8, scoped, tag = 'scoped memory for tpu_custom_call.1']
    #allocation4 [shape = 's32[2]{0}', space=sflag, size = 0x8, scoped, tag = 'scoped memory for tpu_custom_call.1']
    #allocation5 [shape = 'u8[65536]{0}', space=vmem, size = 0x10000, scoped, tag = 'input window, operand 3, single buffered']
    #allocation6 [shape = 's32[1]{0}', space=sflag, size = 0x4, scoped, tag = 'scoped memory for tpu_custom_call.1']
    #allocation7 [shape = 'u8[65536]{0}', space=vmem, size = 0x10000, scoped, tag = 'input window, operand 5, single buffered']
    #allocation8 [shape = 'u8[8192]{0}', space=vmem, size = 0x2000, scoped, tag = 'output window, operand 0']
    %14 = vsyncpa [#allocation3], 0
    %15 = vsyncpa [#allocation6], 0
    %16 = vsyncpa [#allocation4], 0
    %s17 = scalar_lea.sflag [#allocation4], 1
    %18 = vsyncpa %s17, 0
    loop: start=0, step=1, limit=4
    $region2: #{tpu_custom_call.1} parent=1 // loop_pre_header
      _
    $region3: #{tpu_custom_call.1} parent=1 // loop_header
      %s20 = sphi 0, %s24
      %p21 = scmp.ge.s32.totalorder %s20, 4
      %s30 = sphi 0, %s32
      %s33 = sphi 0, %s30
      %s34 = sphi 0, %s33
      %s50 = sphi 0, %s34
      %s54 = sphi 0, %s54
      %s56 = sphi 0, %s54
      %s57 = sphi 0, %s56
      %s71 = sphi 0, %s57
      %s75 = sphi 0, %s75
      %s77 = sphi 0, %s75
      %s78 = sphi 0, %s77
      %s92 = sphi 0, %s78
      %s96 = sphi 0, %s96
      %s98 = sphi 0, %s96
      %s99 = sphi 0, %s98
      %s113 = sphi 0, %s99
      %s117 = sphi 0, %s117
      %s119 = sphi 0, %s117
      %s120 = sphi 0, %s119
      %s134 = sphi 0, %s120
      %s138 = sphi 0, %s138
      %s140 = sphi 0, %s138
      %s141 = sphi 0, %s140
      %s155 = sphi 0, %s141
      %s159 = sphi 0, %s159
      %s161 = sphi 0, %s159
      %s162 = sphi 0, %s161
      %s176 = sphi 0, %s162
      %s182 = sphi 0, %s184
      %s185 = sphi 0, %s182
      %s186 = sphi 0, %s185
      %s202 = sphi 0, %s186
      %s208 = sphi 0, %s210
      %s211 = sphi 0, %s208
      %s212 = sphi 0, %s211
      %s228 = sphi 0, %s212
      %s234 = sphi 0, %s236
      %s237 = sphi 0, %s234
      %s238 = sphi 0, %s237
      %s254 = sphi 0, %s238
    $region4: #{tpu_custom_call.1} parent=1 // loop_header_branch
      %23 = sbr.rel (%p21) target = $region8
    $region5: #{tpu_custom_call.1} parent=1 // loop_body
      %s25 = ssub.s32 %s20, 1
      %s26 = ssub.s32 %s20, 2
      %s27 = sadd.s32 %s20, 1
      %s28 = ssub.s32 %s20, %s27
      %p29 = scmp.eq.s32.totalorder %s28, 0
      %s31 = sadd.s32 %s30, 1
      %s32 = scalar_select %p29, %s30, %s31
      %p35 = pneg %p29
      %p36 = scmp.eq.s32.totalorder %s20, 1
      %p37 = por %p35, %p36
      %p38 = scmp.ne.s32.totalorder %s30, %s33
      %p39 = scmp.eq.s32.totalorder %s20, 0
      %p40 = por %p38, %p39
      %p41 = scmp.ne.s32.totalorder %s30, %s33
      %p42 = scmp.eq.s32.totalorder %s25, 1
      %p43 = por %p41, %p42
      %p44 = scmp.ne.s32.totalorder %s33, %s34
      %p45 = scmp.eq.s32.totalorder %s25, 0
      %p46 = por %p44, %p45
      %p47 = scmp.ne.s32.totalorder %s33, %s34
      %p48 = scmp.eq.s32.totalorder %s26, 1
      %p49 = por %p47, %p48
      %p51 = scmp.ne.s32.totalorder %s34, %s50
      %p52 = scmp.eq.s32.totalorder %s26, 0
      %p53 = por %p51, %p52
      %s55 = sadd.s32 %s54, 1
      %p58 = scmp.eq.s32.totalorder %s20, 1
      %p59 = scmp.ne.s32.totalorder %s54, %s56
      %p60 = scmp.eq.s32.totalorder %s20, 0
      %p61 = por %p59, %p60
      %p62 = scmp.ne.s32.totalorder %s54, %s56
      %p63 = scmp.eq.s32.totalorder %s25, 1
      %p64 = por %p62, %p63
      %p65 = scmp.ne.s32.totalorder %s56, %s57
      %p66 = scmp.eq.s32.totalorder %s25, 0
      %p67 = por %p65, %p66
      %p68 = scmp.ne.s32.totalorder %s56, %s57
      %p69 = scmp.eq.s32.totalorder %s26, 1
      %p70 = por %p68, %p69
      %p72 = scmp.ne.s32.totalorder %s57, %s71
      %p73 = scmp.eq.s32.totalorder %s26, 0
      %p74 = por %p72, %p73
      %s76 = sadd.s32 %s75, 1
      %p79 = scmp.eq.s32.totalorder %s20, 1
      %p80 = scmp.ne.s32.totalorder %s75, %s77
      %p81 = scmp.eq.s32.totalorder %s20, 0
      %p82 = por %p80, %p81
      %p83 = scmp.ne.s32.totalorder %s75, %s77
      %p84 = scmp.eq.s32.totalorder %s25, 1
      %p85 = por %p83, %p84
      %p86 = scmp.ne.s32.totalorder %s77, %s78
      %p87 = scmp.eq.s32.totalorder %s25, 0
      %p88 = por %p86, %p87
      %p89 = scmp.ne.s32.totalorder %s77, %s78
      %p90 = scmp.eq.s32.totalorder %s26, 1
      %p91 = por %p89, %p90
      %p93 = scmp.ne.s32.totalorder %s78, %s92
      %p94 = scmp.eq.s32.totalorder %s26, 0
      %p95 = por %p93, %p94
      %s97 = sadd.s32 %s96, 1
      %p100 = scmp.eq.s32.totalorder %s20, 1
      %p101 = scmp.ne.s32.totalorder %s96, %s98
      %p102 = scmp.eq.s32.totalorder %s20, 0
      %p103 = por %p101, %p102
      %p104 = scmp.ne.s32.totalorder %s96, %s98
      %p105 = scmp.eq.s32.totalorder %s25, 1
      %p106 = por %p104, %p105
      %p107 = scmp.ne.s32.totalorder %s98, %s99
      %p108 = scmp.eq.s32.totalorder %s25, 0
      %p109 = por %p107, %p108
      %p110 = scmp.ne.s32.totalorder %s98, %s99
      %p111 = scmp.eq.s32.totalorder %s26, 1
      %p112 = por %p110, %p111
      %p114 = scmp.ne.s32.totalorder %s99, %s113
      %p115 = scmp.eq.s32.totalorder %s26, 0
      %p116 = por %p114, %p115
      %s118 = sadd.s32 %s117, 1
      %p121 = scmp.eq.s32.totalorder %s20, 1
      %p122 = scmp.ne.s32.totalorder %s117, %s119
      %p123 = scmp.eq.s32.totalorder %s20, 0
      %p124 = por %p122, %p123
      %p125 = scmp.ne.s32.totalorder %s117, %s119
      %p126 = scmp.eq.s32.totalorder %s25, 1
      %p127 = por %p125, %p126
      %p128 = scmp.ne.s32.totalorder %s119, %s120
      %p129 = scmp.eq.s32.totalorder %s25, 0
      %p130 = por %p128, %p129
      %p131 = scmp.ne.s32.totalorder %s119, %s120
      %p132 = scmp.eq.s32.totalorder %s26, 1
      %p133 = por %p131, %p132
      %p135 = scmp.ne.s32.totalorder %s120, %s134
      %p136 = scmp.eq.s32.totalorder %s26, 0
      %p137 = por %p135, %p136
      %s139 = sadd.s32 %s138, 1
      %p142 = scmp.eq.s32.totalorder %s20, 1
      %p143 = scmp.ne.s32.totalorder %s138, %s140
      %p144 = scmp.eq.s32.totalorder %s20, 0
      %p145 = por %p143, %p144
      %p146 = scmp.ne.s32.totalorder %s138, %s140
      %p147 = scmp.eq.s32.totalorder %s25, 1
      %p148 = por %p146, %p147
      %p149 = scmp.ne.s32.totalorder %s140, %s141
      %p150 = scmp.eq.s32.totalorder %s25, 0
      %p151 = por %p149, %p150
      %p152 = scmp.ne.s32.totalorder %s140, %s141
      %p153 = scmp.eq.s32.totalorder %s26, 1
      %p154 = por %p152, %p153
      %p156 = scmp.ne.s32.totalorder %s141, %s155
      %p157 = scmp.eq.s32.totalorder %s26, 0
      %p158 = por %p156, %p157
      %s160 = sadd.s32 %s159, 1
      %p163 = scmp.eq.s32.totalorder %s20, 1
      %p164 = scmp.ne.s32.totalorder %s159, %s161
      %p165 = scmp.eq.s32.totalorder %s20, 0
      %p166 = por %p164, %p165
      %p167 = scmp.ne.s32.totalorder %s159, %s161
      %p168 = scmp.eq.s32.totalorder %s25, 1
      %p169 = por %p167, %p168
      %p170 = scmp.ne.s32.totalorder %s161, %s162
      %p171 = scmp.eq.s32.totalorder %s25, 0
      %p172 = por %p170, %p171
      %p173 = scmp.ne.s32.totalorder %s161, %s162
      %p174 = scmp.eq.s32.totalorder %s26, 1
      %p175 = por %p173, %p174
      %p177 = scmp.ne.s32.totalorder %s162, %s176
      %p178 = scmp.eq.s32.totalorder %s26, 0
      %p179 = por %p177, %p178
      %s180 = ssub.s32 %s20, %s27
      %p181 = scmp.eq.s32.totalorder %s180, 0
      %s183 = sadd.s32 %s182, 1
      %s184 = scalar_select %p181, %s182, %s183
      %p187 = pneg %p181
      %p188 = scmp.eq.s32.totalorder %s20, 1
      %p189 = por %p187, %p188
      %p190 = scmp.ne.s32.totalorder %s182, %s185
      %p191 = scmp.eq.s32.totalorder %s20, 0
      %p192 = por %p190, %p191
      %p193 = scmp.ne.s32.totalorder %s182, %s185
      %p194 = scmp.eq.s32.totalorder %s25, 1
      %p195 = por %p193, %p194
      %p196 = scmp.ne.s32.totalorder %s185, %s186
      %p197 = scmp.eq.s32.totalorder %s25, 0
      %p198 = por %p196, %p197
      %p199 = scmp.ne.s32.totalorder %s185, %s186
      %p200 = scmp.eq.s32.totalorder %s26, 1
      %p201 = por %p199, %p200
      %p203 = scmp.ne.s32.totalorder %s186, %s202
      %p204 = scmp.eq.s32.totalorder %s26, 0
      %p205 = por %p203, %p204
      %s206 = ssub.s32 %s20, %s27
      %p207 = scmp.eq.s32.totalorder %s206, 0
      %s209 = sadd.s32 %s208, 1
      %s210 = scalar_select %p207, %s208, %s209
      %p213 = pneg %p207
      %p214 = scmp.eq.s32.totalorder %s20, 1
      %p215 = por %p213, %p214
      %p216 = scmp.ne.s32.totalorder %s208, %s211
      %p217 = scmp.eq.s32.totalorder %s20, 0
      %p218 = por %p216, %p217
      %p219 = scmp.ne.s32.totalorder %s208, %s211
      %p220 = scmp.eq.s32.totalorder %s25, 1
      %p221 = por %p219, %p220
      %p222 = scmp.ne.s32.totalorder %s211, %s212
      %p223 = scmp.eq.s32.totalorder %s25, 0
      %p224 = por %p222, %p223
      %p225 = scmp.ne.s32.totalorder %s211, %s212
      %p226 = scmp.eq.s32.totalorder %s26, 1
      %p227 = por %p225, %p226
      %p229 = scmp.ne.s32.totalorder %s212, %s228
      %p230 = scmp.eq.s32.totalorder %s26, 0
      %p231 = por %p229, %p230
      %s232 = ssub.s32 %s20, %s27
      %p233 = scmp.eq.s32.totalorder %s232, 0
      %s235 = sadd.s32 %s234, 1
      %s236 = scalar_select %p233, %s234, %s235
      %p239 = pneg %p233
      %p240 = scmp.eq.s32.totalorder %s20, 1
      %p241 = por %p239, %p240
      %p242 = scmp.ne.s32.totalorder %s234, %s237
      %p243 = scmp.eq.s32.totalorder %s20, 0
      %p244 = por %p242, %p243
      %p245 = scmp.ne.s32.totalorder %s234, %s237
      %p246 = scmp.eq.s32.totalorder %s25, 1
      %p247 = por %p245, %p246
      %p248 = scmp.ne.s32.totalorder %s237, %s238
      %p249 = scmp.eq.s32.totalorder %s25, 0
      %p250 = por %p248, %p249
      %p251 = scmp.ne.s32.totalorder %s237, %s238
      %p252 = scmp.eq.s32.totalorder %s26, 1
      %p253 = por %p251, %p252
      %p255 = scmp.ne.s32.totalorder %s238, %s254
      %p256 = scmp.eq.s32.totalorder %s26, 0
      %p257 = por %p255, %p256
      %p258 = scmp.le.s32.totalorder 1, %s20
      %p259 = scmp.lt.s32.totalorder %s20, 3
      %p260 = pnand %p258, %p259
      %p261 = pneg %p260
      // Predicated region
      $region9: #{tpu_custom_call.1} parent=5 // pred_check
        _
      $region10: #{tpu_custom_call.1} parent=5 // pred_check_branch
        %263 = sbr.rel (%p260) target = $region12
      $region11: #{tpu_custom_call.1} parent=5 // pred_region
        %s264 = ssub.s32 %s20, 1
        // Predicated region
        $region13: #{tpu_custom_call.1} parent=11 // pred_check
          %p265 = pneg %p67
        $region14: #{tpu_custom_call.1} parent=11 // pred_check_branch
          %267 = sbr.rel (%p265) target = $region16
        $region15: #{tpu_custom_call.1} parent=11 // pred_region
          %269 = vsyncadd [#allocation3], 0
          %s270 = sshll.u32 %s1, 4
          %s271 = int_to_ptr.hbm [resolvable:$true] %s270
          %s272 = sshll.u32 [#allocation2], 4
          %s273 = int_to_ptr.vmem [resolvable:$true] %s272
          %278 = dma.hbm_to_vmem [thread:$0]  %s271, 2048, %s273, [#allocation3], 128, 128, 8
        $region16: #{tpu_custom_call.1} parent=11 // pred_fallthru
          _
        // Predicated region
        $region17: #{tpu_custom_call.1} parent=11 // pred_check
          %p279 = pneg %p88
        $region18: #{tpu_custom_call.1} parent=11 // pred_check_branch
          %281 = sbr.rel (%p279) target = $region20
        $region19: #{tpu_custom_call.1} parent=11 // pred_region
          _
        $region20: #{tpu_custom_call.1} parent=11 // pred_fallthru
          _
        // Predicated region
        $region21: #{tpu_custom_call.1} parent=11 // pred_check
          %p282 = pneg %p109
        $region22: #{tpu_custom_call.1} parent=11 // pred_check_branch
          %284 = sbr.rel (%p282) target = $region24
        $region23: #{tpu_custom_call.1} parent=11 // pred_region
          %286 = vsyncadd [#allocation6], 0
          %s287 = sshll.u32 %s3, 4
          %s288 = int_to_ptr.hbm [resolvable:$true] %s287
          %s289 = sshll.u32 [#allocation5], 4
          %s290 = int_to_ptr.vmem [resolvable:$true] %s289
          %295 = dma.hbm_to_vmem [thread:$0]  %s288, 2048, %s290, [#allocation6], 128, 128, 8
        $region24: #{tpu_custom_call.1} parent=11 // pred_fallthru
          _
        // Predicated region
        $region25: #{tpu_custom_call.1} parent=11 // pred_check
          %p296 = pneg %p130
        $region26: #{tpu_custom_call.1} parent=11 // pred_check_branch
          %298 = sbr.rel (%p296) target = $region28
        $region27: #{tpu_custom_call.1} parent=11 // pred_region
          _
        $region28: #{tpu_custom_call.1} parent=11 // pred_fallthru
          _
        // Predicated region
        $region29: #{tpu_custom_call.1} parent=11 // pred_check
          %p299 = pneg %p151
        $region30: #{tpu_custom_call.1} parent=11 // pred_check_branch
          %301 = sbr.rel (%p299) target = $region32
        $region31: #{tpu_custom_call.1} parent=11 // pred_region
          %303 = vsyncadd [#allocation6], 0
          %s304 = sshll.u32 %s5, 4
          %s305 = int_to_ptr.hbm [resolvable:$true] %s304
          %s306 = sshll.u32 [#allocation7], 4
          %s307 = int_to_ptr.vmem [resolvable:$true] %s306
          %312 = dma.hbm_to_vmem [thread:$0]  %s305, 2048, %s307, [#allocation6], 128, 128, 8
        $region32: #{tpu_custom_call.1} parent=11 // pred_fallthru
          _
        // Predicated region
        $region33: #{tpu_custom_call.1} parent=11 // pred_check
          %p313 = pneg %p172
        $region34: #{tpu_custom_call.1} parent=11 // pred_check_branch
          %315 = sbr.rel (%p313) target = $region36
        $region35: #{tpu_custom_call.1} parent=11 // pred_region
          _
        $region36: #{tpu_custom_call.1} parent=11 // pred_fallthru
          _
      $region12: #{tpu_custom_call.1} parent=5 // pred_fallthru
        _
      %p316 = scmp.lt.s32.totalorder %s20, 2
      // Predicated region
      $region37: #{tpu_custom_call.1} parent=5 // pred_check
        %p317 = pneg %p316
      $region38: #{tpu_custom_call.1} parent=5 // pred_check_branch
        %319 = sbr.rel (%p317) target = $region40
      $region39: #{tpu_custom_call.1} parent=5 // pred_region
        // Predicated region
        $region41: #{tpu_custom_call.1} parent=39 // pred_check
          %p320 = pneg %p40
        $region42: #{tpu_custom_call.1} parent=39 // pred_check_branch
          %322 = sbr.rel (%p320) target = $region44
        $region43: #{tpu_custom_call.1} parent=39 // pred_region
          %p323 = scmp.lt.s32.totalorder %s20, 1
          %s324 = scalar_select %p323, %s20, 1
          %s325 = smul.addr %s324, 8
          %s326 = scalar_lea.vmem %s0, %s325
        $region44: #{tpu_custom_call.1} parent=39 // pred_fallthru
          _
        // Predicated region
        $region45: #{tpu_custom_call.1} parent=39 // pred_check
          %p327 = pneg %p192
        $region46: #{tpu_custom_call.1} parent=39 // pred_check_branch
          %329 = sbr.rel (%p327) target = $region48
        $region47: #{tpu_custom_call.1} parent=39 // pred_region
          %p330 = scmp.lt.s32.totalorder %s20, 1
          %s331 = scalar_select %p330, %s20, 1
          %s332 = smul.addr %s331, 8
          %s333 = scalar_lea.vmem %s7, %s332
        $region48: #{tpu_custom_call.1} parent=39 // pred_fallthru
          _
        // Predicated region
        $region49: #{tpu_custom_call.1} parent=39 // pred_check
          %p334 = pneg %p218
        $region50: #{tpu_custom_call.1} parent=39 // pred_check_branch
          %336 = sbr.rel (%p334) target = $region52
        $region51: #{tpu_custom_call.1} parent=39 // pred_region
          %p337 = scmp.lt.s32.totalorder %s20, 1
          %s338 = scalar_select %p337, %s20, 1
          %s339 = smul.addr %s338, 8
          %s340 = scalar_lea.vmem %s8, %s339
        $region52: #{tpu_custom_call.1} parent=39 // pred_fallthru
          _
      $region40: #{tpu_custom_call.1} parent=5 // pred_fallthru
        _
      %p341 = scmp.le.s32.totalorder 1, %s20
      %p342 = scmp.lt.s32.totalorder %s20, 3
      %p343 = pnand %p341, %p342
      %p344 = pneg %p343
      // Predicated region
      $region53: #{tpu_custom_call.1} parent=5 // pred_check
        _
      $region54: #{tpu_custom_call.1} parent=5 // pred_check_branch
        %346 = sbr.rel (%p343) target = $region56
      $region55: #{tpu_custom_call.1} parent=5 // pred_region
        %s347 = ssub.s32 %s20, 1
        // Predicated region
        $region57: #{tpu_custom_call.1} parent=55 // pred_check
          %p348 = pneg %p67
        $region58: #{tpu_custom_call.1} parent=55 // pred_check_branch
          %350 = sbr.rel (%p348) target = $region60
        $region59: #{tpu_custom_call.1} parent=55 // pred_region
          %352 = dma.done [#allocation3], 2048
        $region60: #{tpu_custom_call.1} parent=55 // pred_fallthru
          _
        // Predicated region
        $region61: #{tpu_custom_call.1} parent=55 // pred_check
          %p353 = pneg %p109
        $region62: #{tpu_custom_call.1} parent=55 // pred_check_branch
          %355 = sbr.rel (%p353) target = $region64
        $region63: #{tpu_custom_call.1} parent=55 // pred_region
          %357 = dma.done [#allocation6], 2048
        $region64: #{tpu_custom_call.1} parent=55 // pred_fallthru
          _
        // Predicated region
        $region65: #{tpu_custom_call.1} parent=55 // pred_check
          %p358 = pneg %p151
        $region66: #{tpu_custom_call.1} parent=55 // pred_check_branch
          %360 = sbr.rel (%p358) target = $region68
        $region67: #{tpu_custom_call.1} parent=55 // pred_region
          %362 = dma.done [#allocation6], 2048
        $region68: #{tpu_custom_call.1} parent=55 // pred_fallthru
          _
        %p363 = scmp.lt.s32.totalorder %s25, 1
        %s364 = scalar_select %p363, %s25, 1
        %s365 = smul.addr %s364, 8
        %s366 = scalar_lea.vmem %s0, %s365
        %p367 = pneg %p46
        %p368 = pneg %p43
        %p369 = pneg %p67
        %p370 = pneg %p64
        %p371 = pneg %p88
        %p372 = pneg %p85
        %p373 = pneg %p109
        %p374 = pneg %p106
        %p375 = pneg %p130
        %p376 = pneg %p127
        %p377 = pneg %p151
        %p378 = pneg %p148
        %p379 = pneg %p172
        %p380 = pneg %p169
        %p381 = scmp.lt.s32.totalorder %s25, 1
        %s382 = scalar_select %p381, %s25, 1
        %s383 = smul.addr %s382, 8
        %s384 = scalar_lea.vmem %s7, %s383
        %p385 = pneg %p198
        %p386 = pneg %p195
        %p387 = scmp.lt.s32.totalorder %s25, 1
        %s388 = scalar_select %p387, %s25, 1
        %s389 = smul.addr %s388, 8
        %s390 = scalar_lea.vmem %s8, %s389
        %p391 = pneg %p224
        %p392 = pneg %p221
        %p393 = pneg %p250
        %p394 = pneg %p247
        %s395 = sand.u32 %s237, 1
        %s396 = scalar_lea.sflag [#allocation4], %s395
        %s397 = sand.u32 %s237, 1
        %s398 = smul.addr %s397, 8
        %s399 = scalar_lea.vmem [#allocation8], %s398
        %p400 = scmp.lt.s32.totalorder %s25, 1
        %s401 = scalar_select %p400, %s25, 1
        %s402 = smul.addr %s401, 8
        %s403 = scalar_lea.vmem %s0, %s402
        %p404 = scmp.lt.s32.totalorder %s25, 1
        %s405 = scalar_select %p404, %s25, 1
        %s406 = smul.addr %s405, 8
        %s407 = scalar_lea.vmem %s7, %s406
        %p408 = scmp.lt.s32.totalorder %s25, 1
        %s409 = scalar_select %p408, %s25, 1
        %s410 = smul.addr %s409, 8
        %s411 = scalar_lea.vmem %s8, %s410
        %v412 = vld [vmem:[%s403] sm:$0xff]
        %v413 = vlaneseq
        %v414 = vand.u32 %v413, 127
        %vm415 = vcmp.lt.s32.totalorder %v414, 16
        %416 = vadd.xlane.f32.xlu0 %v412
        %v417 = vpop.xlane.xlu0 %416
        %v418 = vmul.f32 %v417, 0.0625
        %v419 = vsub.f32 %v412, %v418
        %v420 = vsel %vm415, %v419, 0.0
        %v421 = vmul.f32 %v420, %v420
        %422 = vadd.xlane.f32.xlu0 %v421
        %v423 = vpop.xlane.xlu0 %422
        %v424 = vmul.f32 %v423, 0.0625
        %v425 = vadd.f32 %v424, 1e-05
        %v426 = vrsqrt.pop %v425
        %v427 = vmul.f32 %v426, %v425
        %v428 = vmul.f32 %v427, %v426
        %v429 = vmul.f32 0.5, %v428
        %v430 = vsub.f32 1.5, %v429
        %v431 = vmul.f32 %v426, %v430
        %vm432 = vweird.f32 %v425
        %vm433 = vweird.f32 %v426
        %vm434 = vmor %vm432, %vm433
        %v435 = vsel %vm434, %v426, %v431
        %v436 = vmul.f32 %v425, %v435
        %v437 = vld [vmem:[%s407] sm:$0xff]
        %v438 = vld [vmem:[%s411] sm:$0xff]
        %v439 = vmul.f32 %v435, %v437
        %441 = vset.pattern.permute.xlu0 0
        %442 = vperm.xlu0 %441, %v439
        %v443 = vpop.permute.xlu0 %442
        %v445 = vmul.f32 %v420, %v443
        %447 = vset.pattern.permute.xlu0 0
        %448 = vperm.xlu0 %447, %v438
        %v449 = vpop.permute.xlu0 %448
        %v451 = vadd.f32 %v445, %v449
        %v452 = vld [vmem:[#allocation2] sm:$0xff]
        %v453 = vld [vmem:[#allocation2 + $0x8] sm:$0xff]
        %v454 = vld [vmem:[#allocation2 + $0x10] sm:$0xff]
        %v455 = vld [vmem:[#allocation2 + $0x18] sm:$0xff]
        %v456 = vld [vmem:[#allocation2 + $0x20] sm:$0xff]
        %v457 = vld [vmem:[#allocation2 + $0x28] sm:$0xff]
        %v458 = vld [vmem:[#allocation2 + $0x30] sm:$0xff]
        %v459 = vld [vmem:[#allocation2 + $0x38] sm:$0xff]
        %v460 = vld [vmem:[#allocation2 + $0x40] sm:$0xff]
        %v461 = vld [vmem:[#allocation2 + $0x48] sm:$0xff]
        %v462 = vld [vmem:[#allocation2 + $0x50] sm:$0xff]
        %v463 = vld [vmem:[#allocation2 + $0x58] sm:$0xff]
        %v464 = vld [vmem:[#allocation2 + $0x60] sm:$0xff]
        %v465 = vld [vmem:[#allocation2 + $0x68] sm:$0xff]
        %v466 = vld [vmem:[#allocation2 + $0x70] sm:$0xff]
        %v467 = vld [vmem:[#allocation2 + $0x78] sm:$0xff]
        %v468 = vld [vmem:[%s2] sm:$0x1]
        %v470 = vperm.slane %v468, 0
        %472 = vmatpush.msra.mxu0 %v467
        %473 = vmatpush.msra.mxu0 %v466
        %474 = vmatpush.msra.mxu0 %v465
        %475 = vmatpush.msra.mxu0 %v464
        %476 = vmatpush.msra.mxu0 %v463
        %477 = vmatpush.msra.mxu0 %v462
        %478 = vmatpush.msra.mxu0 %v461
        %479 = vmatpush.msra.mxu0 %v460
        %480 = vmatpush.msra.mxu0 %v459
        %481 = vmatpush.msra.mxu0 %v458
        %482 = vmatpush.msra.mxu0 %v457
        %483 = vmatpush.msra.mxu0 %v456
        %484 = vmatpush.msra.mxu0 %v455
        %485 = vmatpush.msra.mxu0 %v454
        %486 = vmatpush.msra.mxu0 %v453
        %487 = vmatpush.msra.mxu0 %v452
        %488 = vmatmul.f32.gmra.mxu0 %v451
        %v489 = vpop.f32.mrf.mxu0
        %v490 = vadd.f32 %v470, %v489
        %491 = vdwg.mxu0
        %v492 = vmax.f32 %v490, 0.0
        %v493 = vld [vmem:[#allocation5] sm:$0xff]
        %v494 = vld [vmem:[#allocation5 + $0x8] sm:$0xff]
        %v495 = vld [vmem:[#allocation5 + $0x10] sm:$0xff]
        %v496 = vld [vmem:[#allocation5 + $0x18] sm:$0xff]
        %v497 = vld [vmem:[#allocation5 + $0x20] sm:$0xff]
        %v498 = vld [vmem:[#allocation5 + $0x28] sm:$0xff]
        %v499 = vld [vmem:[#allocation5 + $0x30] sm:$0xff]
        %v500 = vld [vmem:[#allocation5 + $0x38] sm:$0xff]
        %v501 = vld [vmem:[#allocation5 + $0x40] sm:$0xff]
        %v502 = vld [vmem:[#allocation5 + $0x48] sm:$0xff]
        %v503 = vld [vmem:[#allocation5 + $0x50] sm:$0xff]
        %v504 = vld [vmem:[#allocation5 + $0x58] sm:$0xff]
        %v505 = vld [vmem:[#allocation5 + $0x60] sm:$0xff]
        %v506 = vld [vmem:[#allocation5 + $0x68] sm:$0xff]
        %v507 = vld [vmem:[#allocation5 + $0x70] sm:$0xff]
        %v508 = vld [vmem:[#allocation5 + $0x78] sm:$0xff]
        %v509 = vld [vmem:[%s4] sm:$0x1]
        %v511 = vperm.slane %v509, 0
        %513 = vmatpush.msra.mxu0 %v508
        %514 = vmatpush.msra.mxu0 %v507
        %515 = vmatpush.msra.mxu0 %v506
        %516 = vmatpush.msra.mxu0 %v505
        %517 = vmatpush.msra.mxu0 %v504
        %518 = vmatpush.msra.mxu0 %v503
        %519 = vmatpush.msra.mxu0 %v502
        %520 = vmatpush.msra.mxu0 %v501
        %521 = vmatpush.msra.mxu0 %v500
        %522 = vmatpush.msra.mxu0 %v499
        %523 = vmatpush.msra.mxu0 %v498
        %524 = vmatpush.msra.mxu0 %v497
        %525 = vmatpush.msra.mxu0 %v496
        %526 = vmatpush.msra.mxu0 %v495
        %527 = vmatpush.msra.mxu0 %v494
        %528 = vmatpush.msra.mxu0 %v493
        %529 = vmatmul.f32.gmra.mxu0 %v492
        %v530 = vpop.f32.mrf.mxu0
        %v531 = vadd.f32 %v511, %v530
        %532 = vdwg.mxu0
        %v533 = vadd.f32 %v451, %v531
        %v534 = vld [vmem:[#allocation7] sm:$0xff]
        %v535 = vld [vmem:[#allocation7 + $0x8] sm:$0xff]
        %v536 = vld [vmem:[#allocation7 + $0x10] sm:$0xff]
        %v537 = vld [vmem:[#allocation7 + $0x18] sm:$0xff]
        %v538 = vld [vmem:[#allocation7 + $0x20] sm:$0xff]
        %v539 = vld [vmem:[#allocation7 + $0x28] sm:$0xff]
        %v540 = vld [vmem:[#allocation7 + $0x30] sm:$0xff]
        %v541 = vld [vmem:[#allocation7 + $0x38] sm:$0xff]
        %v542 = vld [vmem:[#allocation7 + $0x40] sm:$0xff]
        %v543 = vld [vmem:[#allocation7 + $0x48] sm:$0xff]
        %v544 = vld [vmem:[#allocation7 + $0x50] sm:$0xff]
        %v545 = vld [vmem:[#allocation7 + $0x58] sm:$0xff]
        %v546 = vld [vmem:[#allocation7 + $0x60] sm:$0xff]
        %v547 = vld [vmem:[#allocation7 + $0x68] sm:$0xff]
        %v548 = vld [vmem:[#allocation7 + $0x70] sm:$0xff]
        %v549 = vld [vmem:[#allocation7 + $0x78] sm:$0xff]
        %v550 = vld [vmem:[%s6] sm:$0x1]
        %v552 = vperm.slane %v550, 0
        %554 = vmatpush.msra.mxu0 %v549
        %555 = vmatpush.msra.mxu0 %v548
        %556 = vmatpush.msra.mxu0 %v547
        %557 = vmatpush.msra.mxu0 %v546
        %558 = vmatpush.msra.mxu0 %v545
        %559 = vmatpush.msra.mxu0 %v544
        %560 = vmatpush.msra.mxu0 %v543
        %561 = vmatpush.msra.mxu0 %v542
        %562 = vmatpush.msra.mxu0 %v541
        %563 = vmatpush.msra.mxu0 %v540
        %564 = vmatpush.msra.mxu0 %v539
        %565 = vmatpush.msra.mxu0 %v538
        %566 = vmatpush.msra.mxu0 %v537
        %567 = vmatpush.msra.mxu0 %v536
        %568 = vmatpush.msra.mxu0 %v535
        %569 = vmatpush.msra.mxu0 %v534
        %570 = vmatmul.f32.gmra.mxu0 %v533
        %v571 = vpop.f32.mrf.mxu0
        %v572 = vadd.f32 %v552, %v571
        %573 = vdwg.mxu0
        %v574 = vadd.f32 %v437, 1e-10
        %v575 = vrcp.pop %v574
        %v576 = vmul.f32 %v574, %v575
        %v577 = vsub.f32 1.0, %v576
        %v578 = vmul.f32 %v575, %v577
        %v579 = vadd.f32 %v575, %v578
        %vm580 = vweird.f32 %v574
        %vm581 = vweird.f32 %v575
        %vm582 = vmor %vm580, %vm581
        %v583 = vsel %vm582, %v575, %v579
        %v584 = vand.u32 2147483647, %v574
        %vm585 = vcmp.eq.f32.partialorder %v584, 8.507059e+37
        %v586 = vand.u32 %v574, 2147483648
        %v587 = vor.u32 1.1754944e-38, %v586
        %v588 = vsel %vm585, %v587, %v583
        %v589 = vsub.f32 %v572, %v449
        %591 = vset.pattern.permute.xlu0 0
        %592 = vperm.xlu0 %591, %v588
        %v593 = vpop.permute.xlu0 %592
        %v595 = vmul.f32 %v589, %v593
        %v596 = vmul.f32 %v595, %v436
        %v597 = vadd.f32 %v596, %v418
        %598 = vst [vmem:[%s399] sm:$0xff] %v597
        %s599 = sand.u32 %s237, 1
        %s600 = scalar_lea.sflag [#allocation4], %s599
        %s601 = sand.u32 %s237, 1
        %s602 = smul.addr %s601, 8
        %s603 = scalar_lea.vmem [#allocation8], %s602
        // Predicated region
        $region69: #{tpu_custom_call.1} parent=55 // pred_check
          %p604 = pneg %p247
        $region70: #{tpu_custom_call.1} parent=55 // pred_check_branch
          %606 = sbr.rel (%p604) target = $region72
        $region71: #{tpu_custom_call.1} parent=55 // pred_region
          %608 = vsyncadd %s600, 0
          %s609 = smul.addr %s25, 8
          %s610 = scalar_lea.hbm %s9, %s609
          %s612 = sshll.u32 %s603, 4
          %s613 = int_to_ptr.vmem [resolvable:$true] %s612
          %s614 = sshll.u32 %s610, 4
          %s615 = int_to_ptr.hbm [resolvable:$true] %s614
          %617 = dma.vmem_to_hbm [thread:$0]  %s613, 128, %s615, %s600
        $region72: #{tpu_custom_call.1} parent=55 // pred_fallthru
          _
      $region56: #{tpu_custom_call.1} parent=5 // pred_fallthru
        _
      %p618 = scmp.le.s32.totalorder 2, %s20
      // Predicated region
      $region73: #{tpu_custom_call.1} parent=5 // pred_check
        %p619 = pneg %p618
      $region74: #{tpu_custom_call.1} parent=5 // pred_check_branch
        %621 = sbr.rel (%p619) target = $region76
      $region75: #{tpu_custom_call.1} parent=5 // pred_region
        %s622 = ssub.s32 %s20, 2
        // Predicated region
        $region77: #{tpu_custom_call.1} parent=75 // pred_check
          %p623 = pneg %p253
        $region78: #{tpu_custom_call.1} parent=75 // pred_check_branch
          %625 = sbr.rel (%p623) target = $region80
        $region79: #{tpu_custom_call.1} parent=75 // pred_region
          %s626 = sand.u32 %s238, 1
          %s627 = scalar_lea.sflag [#allocation4], %s626
          %s628 = sand.u32 %s238, 1
          %s629 = smul.addr %s628, 8
          %s630 = scalar_lea.vmem [#allocation8], %s629
          %632 = dma.done %s627, 128
        $region80: #{tpu_custom_call.1} parent=75 // pred_fallthru
          _
      $region76: #{tpu_custom_call.1} parent=5 // pred_fallthru
        _
    $region6: #{tpu_custom_call.1} parent=1 // loop_footer
      %s24 = sadd.s32 1, %s20
    $region7: #{tpu_custom_call.1} parent=1 // loop_footer_branch
      %19 = sbr.rel target = $region3
    $region8: #{tpu_custom_call.1} parent=1 // loop_exit
      _
    %633 = vsyncpa [#allocation3], 1
    %s634 = scalar_lea.sflag [#allocation3], 1
    %635 = vsyncpa %s634, 1
    %636 = vsyncpa [#allocation6], 1
    %637 = vsyncpa [#allocation4], 1
    %s638 = scalar_lea.sflag [#allocation4], 1
    %639 = vsyncpa %s638, 1

</llo_original>
